<compile_context>
chip_gen: v7x
topology: tpu7x:2x2x1
jax: 0.10.0
libtpu: 0.0.40
codegen_flags: <defaults>
</compile_context>

<pallas_src>
import functools

import jax
import jax.numpy as jnp
from jax.experimental import pallas as pl
from jax.experimental.pallas import tpu as pltpu

_LANE = 128
_BATCH_ALIGN = 16  # bf16 sublane packing => keep batch tiles multiples of 16


def _round_up(x, m):
    return ((x + m - 1) // m) * m


def _leaky_relu(x, slope=0.01):
    return jnp.where(x > 0, x, slope * x)


# --------------------------------------------------------------------------- kernel
def ae_kernel(x_ref,
              w1_ref, b1_ref,   # encoder hidden:  [origP, interP], [1, interP]
              w2_ref, b2_ref,   # encoder output:  [interP, codeP], [1, codeP]
              w3_ref, b3_ref,   # decoder hidden:  [codeP, interP], [1, interP]
              w4_ref, b4_ref,   # decoder output:  [interP, origP], [1, origP]
              out_ref):
    bf16 = jnp.bfloat16
    x = x_ref[...].astype(bf16)                                     # cast in-kernel

    # ---- Encoder ----
    h = jnp.dot(x, w1_ref[...], preferred_element_type=jnp.float32) + b1_ref[...]
    # dropout(ones, p=0.0) * h  ->  exact identity (folded away)
    h = _leaky_relu(h.astype(bf16))                                 # bf16 VPU work
    c = jnp.dot(h, w2_ref[...], preferred_element_type=jnp.float32) + b2_ref[...]
    code = 0.5 * jnp.tanh(0.5 * c) + 0.5                            # exact sigmoid, 1 EUP push

    # ---- Decoder ----
    d = jnp.dot(code.astype(bf16), w3_ref[...],
                preferred_element_type=jnp.float32) + b3_ref[...]
    d = _leaky_relu(d.astype(bf16))
    o = jnp.dot(d, w4_ref[...], preferred_element_type=jnp.float32) + b4_ref[...]

    out_ref[...] = o.astype(out_ref.dtype)


# ----------------------------------------------------------------------- param prep
def prepare_params(params):
    """One-time: pad feature dims to multiples of 128 and pre-cast weights to bf16.

    Hoisted out of the forward pass so the per-call path never re-pads / re-converts
    the weight set (pure HBM overhead for a mem-bound kernel).
    Weights are pre-transposed to [in_features, out_features]; biases stay f32.
    """
    w1, b1 = params["w1"], params["b1"]   # [orig, inter], [1, inter]
    w2, b2 = params["w2"], params["b2"]   # [inter, code], [1, code]
    w3, b3 = params["w3"], params["b3"]   # [code, inter], [1, inter]
    w4, b4 = params["w4"], params["b4"]   # [inter, orig], [1, orig]
    orig_dim, inter_dim = w1.shape
    code_dim = w2.shape[1]
    Dp = _round_up(orig_dim, _LANE)
    Hp = _round_up(inter_dim, _LANE)
    Cp = _round_up(code_dim, _LANE)

    bf16, f32 = jnp.bfloat16, jnp.float32

    def pad2(a, r, c, dtype):
        return jnp.pad(a, ((0, r - a.shape[0]), (0, c - a.shape[1]))).astype(dtype)

    return dict(
        w1=pad2(w1, Dp, Hp, bf16), b1=pad2(b1, 1, Hp, f32),
        w2=pad2(w2, Hp, Cp, bf16), b2=pad2(b2, 1, Cp, f32),
        w3=pad2(w3, Cp, Hp, bf16), b3=pad2(b3, 1, Hp, f32),
        w4=pad2(w4, Hp, Dp, bf16), b4=pad2(b4, 1, Dp, f32),
    )


def _vmem_limit_bytes(bb, Dp, Hp, Cp, x_itemsize, out_itemsize):
    """Explicit VMEM budget: x/out tiles double-buffered, weights single-buffered."""
    x_tile = bb * Dp * x_itemsize * 2
    out_tile = bb * Dp * out_itemsize * 2
    weights = (Dp * Hp + Hp * Cp + Cp * Hp + Hp * Dp) * 2           # bf16
    biases = (2 * Hp + Cp + Dp) * 4
    interm = 2 * bb * max(Hp, Cp, Dp) * 4                           # live f32 headroom
    need = x_tile + out_tile + weights + biases + interm + (2 << 20)
    # Floor above v5e's 16 MiB default scoped limit; cap at v7x's 64 MiB physical.
    # TODO(synk): if weights alone exceed ~24 MiB bf16 (huge inter/orig dims), add a
    # reduction grid axis over Hp/Dp instead of keeping all four matrices resident.
    return int(min(max(need, 16 << 20), 64 << 20))


# -------------------------------------------------------------------------- forward
@functools.partial(jax.jit, static_argnames=("block_b", "out_dtype"))
def ae_forward(x, prepared, block_b=512, out_dtype=jnp.float32):
    """x: [B, orig_dim] float32. prepared: output of prepare_params()."""
    B, orig_dim = x.shape
    Dp, Hp = prepared["w1"].shape
    Cp = prepared["w2"].shape[1]
    assert Dp == _round_up(orig_dim, _LANE), "prepared params don't match x feature dim"

    # Batch tiling: balance tile sizes (caps padding waste), and emit at least two
    # grid steps whenever the batch allows it so the 'parallel' axis can shard across
    # the two TensorCores on v7x (negligible extra overhead on v5e/v6e).
    n_tiles = max(1, pl.cdiv(B, block_b))
    if B >= 2 * _BATCH_ALIGN:
        n_tiles = max(n_tiles, 2)
    bb = _round_up(pl.cdiv(B, n_tiles), _BATCH_ALIGN)
    n_tiles = pl.cdiv(B, bb)
    Bp = bb * n_tiles

    aligned = (Bp == B) and (Dp == orig_dim)
    if aligned:
        xk = x                      # no wrapper-side pad/convert pass; bf16 cast in-kernel
    else:
        xk = jnp.pad(x, ((0, Bp - B), (0, Dp - orig_dim))).astype(jnp.bfloat16)

    out_shape = jax.ShapeDtypeStruct((Bp, Dp), out_dtype)
    args = (xk,
            prepared["w1"], prepared["b1"], prepared["w2"], prepared["b2"],
            prepared["w3"], prepared["b3"], prepared["w4"], prepared["b4"])
    vmem = _vmem_limit_bytes(bb, Dp, Hp, Cp, xk.dtype.itemsize,
                             jnp.dtype(out_dtype).itemsize)

    if n_tiles == 1:
        # Tiny batch: skip the grid / pipelining machinery entirely.
        out_p = pl.pallas_call(
            ae_kernel,
            out_shape=out_shape,
            compiler_params=pltpu.CompilerParams(vmem_limit_bytes=vmem),
        )(*args)
    else:
        def const2(shape):
            # Grid-invariant weight/bias block: DMA'd once, reused every step,
            # single-buffered (double-buffering a constant block wastes VMEM).
            return pl.BlockSpec(shape, lambda i: (0, 0),
                                pipeline_mode=pl.Buffered(1))

        out_p = pl.pallas_call(
            ae_kernel,
            out_shape=out_shape,
            grid_spec=pltpu.PrefetchScalarGridSpec(
                num_scalar_prefetch=0,
                grid=(n_tiles,),
                in_specs=[
                    pl.BlockSpec((bb, Dp), lambda i: (i, 0)),      # x tile
                    const2((Dp, Hp)), const2((1, Hp)),
                    const2((Hp, Cp)), const2((1, Cp)),
                    const2((Cp, Hp)), const2((1, Hp)),
                    const2((Hp, Dp)), const2((1, Dp)),
                ],
                out_specs=pl.BlockSpec((bb, Dp), lambda i: (i, 0)),
            ),
            compiler_params=pltpu.CompilerParams(
                dimension_semantics=("parallel",),                 # megacore sharding
                vmem_limit_bytes=vmem),
        )(*args)

    if aligned:
        return out_p                 # no extra output copy in the aligned common case
    return out_p[:B, :orig_dim]


# ----------------------------------------------------------------------- test setup
def init_params(key, orig_dim, inter_dim, code_dim):
    """Deterministic init mimicking nn.Linear (uniform +/- 1/sqrt(fan_in)).
    Weights stored pre-transposed as [in, out], all float32."""
    ks = jax.random.split(key, 8)

    def lin(kw, kb, fan_in, fan_out):
        bound = 1.0 / jnp.sqrt(fan_in)
        w = jax.random.uniform(kw, (fan_in, fan_out), jnp.float32, -bound, bound)
        b = jax.random.uniform(kb, (1, fan_out), jnp.float32, -bound, bound)
        return w, b

    w1, b1 = lin(ks[0], ks[1], orig_dim, inter_dim)   # encoder_hidden_layer
    w2, b2 = lin(ks[2], ks[3], inter_dim, code_dim)   # encoder_output_layer
    w3, b3 = lin(ks[4], ks[5], code_dim, inter_dim)   # decoder_hidden_layer
    w4, b4 = lin(ks[6], ks[7], inter_dim, orig_dim)   # decoder_output_layer
    return dict(w1=w1, b1=b1, w2=w2, b2=b2, w3=w3, b3=b3, w4=w4, b4=b4)


def ae_reference(x, p):
    """Pure-JAX f32 reference of the PyTorch forward (dropout p=0 -> identity)."""
    h = _leaky_relu(x @ p["w1"] + p["b1"])
    code = jax.nn.sigmoid(h @ p["w2"] + p["b2"])
    d = _leaky_relu(code @ p["w3"] + p["b3"])
    return d @ p["w4"] + p["b4"]


if __name__ == "__main__":
    key = jax.random.PRNGKey(0)
    kx1, kx2, kx3, kp1, kp2 = jax.random.split(key, 5)

    # bf16 matmul inputs => compare to the f32 reference with loosened tolerance.
    TOL = dict(atol=5e-2, rtol=5e-2)

    # Model A: small, unaligned dims (exercise padding paths).
    orig_dim, inter_dim, code_dim = 16, 32, 8
    raw = init_params(kp1, orig_dim, inter_dim, code_dim)
    prep = prepare_params(raw)

    # 1) tiny batch -> single-tile, grid-less path (padded x)
    x1 = jax.random.normal(kx1, (8, orig_dim), jnp.float32)
    out1 = jax.block_until_ready(ae_forward(x1, prep))
    ref1 = ae_reference(x1, raw)
    assert out1.shape == x1.shape
    assert jnp.allclose(out1, ref1, **TOL), "mismatch vs reference (grid-less path)"

    # 2) batch not divisible by the tile -> gridded, batch-padded path
    x2 = jax.random.normal(kx2, (40, orig_dim), jnp.float32)
    out2 = jax.block_until_ready(ae_forward(x2, prep, block_b=16))
    ref2 = ae_reference(x2, raw)
    assert out2.shape == x2.shape
    assert jnp.allclose(out2, ref2, **TOL), "mismatch vs reference (gridded path)"

    # Model B: lane-aligned dims + tile-divisible batch -> zero-copy wrapper path.
    orig_dim_b, inter_dim_b, code_dim_b = 128, 64, 32
    raw_b = init_params(kp2, orig_dim_b, inter_dim_b, code_dim_b)
    prep_b = prepare_params(raw_b)
    x3 = jax.random.normal(kx3, (64, orig_dim_b), jnp.float32)
    out3 = jax.block_until_ready(ae_forward(x3, prep_b, block_b=32))
    ref3 = ae_reference(x3, raw_b)
    assert out3.shape == x3.shape
    assert jnp.allclose(out3, ref3, **TOL), "mismatch vs reference (aligned path)"

    print("KERNEL_OK")
</pallas_src>

<mosaic_0001>
module attributes {stable_mosaic.version = 11 : i64} {
  func.func @ae_kernel(%arg0: memref<16x128xbf16, #tpu.memory_space<vmem>>, %arg1: memref<128x128xbf16, #tpu.memory_space<vmem>>, %arg2: memref<1x128xf32, #tpu.memory_space<vmem>>, %arg3: memref<128x128xbf16, #tpu.memory_space<vmem>>, %arg4: memref<1x128xf32, #tpu.memory_space<vmem>>, %arg5: memref<128x128xbf16, #tpu.memory_space<vmem>>, %arg6: memref<1x128xf32, #tpu.memory_space<vmem>>, %arg7: memref<128x128xbf16, #tpu.memory_space<vmem>>, %arg8: memref<1x128xf32, #tpu.memory_space<vmem>>, %arg9: memref<16x128xf32, #tpu.memory_space<vmem>>) attributes {dimension_semantics = [], scalar_prefetch = 0 : i64, scratch_operands = 0 : i64, tpu.core_type = #tpu.core_type<tc>} {
    %c0 = arith.constant 0 : index
    %c0_0 = arith.constant 0 : index
    %0 = vector.load %arg0[%c0, %c0_0] : memref<16x128xbf16, #tpu.memory_space<vmem>>, vector<16x128xbf16>
    %c0_1 = arith.constant 0 : index
    %c0_2 = arith.constant 0 : index
    %1 = vector.load %arg1[%c0_1, %c0_2] : memref<128x128xbf16, #tpu.memory_space<vmem>>, vector<128x128xbf16>
    %cst = arith.constant dense<0.000000e+00> : vector<16x128xf32>
    %2 = tpu.matmul %0, %1, %cst {dimension_numbers = #tpu.dot_dimension_numbers<[1], [0], [0], [1], [0, 0, 1, 1], [], []>} : vector<16x128xbf16>, vector<128x128xbf16>, vector<16x128xf32> -> vector<16x128xf32>
    %c0_3 = arith.constant 0 : index
    %c0_4 = arith.constant 0 : index
    %3 = vector.load %arg2[%c0_3, %c0_4] : memref<1x128xf32, #tpu.memory_space<vmem>>, vector<1x128xf32>
    %4 = vector.broadcast %3 : vector<1x128xf32> to vector<16x128xf32>
    %5 = arith.addf %2, %4 : vector<16x128xf32>
    %6 = arith.truncf %5 : vector<16x128xf32> to vector<16x128xbf16>
    %cst_5 = arith.constant 0.000000e+00 : bf16
    %7 = vector.broadcast %cst_5 : bf16 to vector<16x128xbf16>
    %8 = arith.cmpf ogt, %6, %7 : vector<16x128xbf16>
    %cst_6 = arith.constant 1.000980e-02 : bf16
    %9 = vector.broadcast %cst_6 : bf16 to vector<16x128xbf16>
    %10 = arith.mulf %9, %6 : vector<16x128xbf16>
    %11 = arith.select %8, %6, %10 : vector<16x128xi1>, vector<16x128xbf16>
    %c0_7 = arith.constant 0 : index
    %c0_8 = arith.constant 0 : index
    %12 = vector.load %arg3[%c0_7, %c0_8] : memref<128x128xbf16, #tpu.memory_space<vmem>>, vector<128x128xbf16>
    %cst_9 = arith.constant dense<0.000000e+00> : vector<16x128xf32>
    %13 = tpu.matmul %11, %12, %cst_9 {dimension_numbers = #tpu.dot_dimension_numbers<[1], [0], [0], [1], [0, 0, 1, 1], [], []>} : vector<16x128xbf16>, vector<128x128xbf16>, vector<16x128xf32> -> vector<16x128xf32>
    %c0_10 = arith.constant 0 : index
    %c0_11 = arith.constant 0 : index
    %14 = vector.load %arg4[%c0_10, %c0_11] : memref<1x128xf32, #tpu.memory_space<vmem>>, vector<1x128xf32>
    %15 = vector.broadcast %14 : vector<1x128xf32> to vector<16x128xf32>
    %16 = arith.addf %13, %15 : vector<16x128xf32>
    %cst_12 = arith.constant 5.000000e-01 : f32
    %17 = vector.broadcast %cst_12 : f32 to vector<16x128xf32>
    %18 = arith.mulf %17, %16 : vector<16x128xf32>
    %19 = math.tanh %18 : vector<16x128xf32>
    %cst_13 = arith.constant 5.000000e-01 : f32
    %20 = vector.broadcast %cst_13 : f32 to vector<16x128xf32>
    %21 = arith.mulf %20, %19 : vector<16x128xf32>
    %cst_14 = arith.constant 5.000000e-01 : f32
    %22 = vector.broadcast %cst_14 : f32 to vector<16x128xf32>
    %23 = arith.addf %21, %22 : vector<16x128xf32>
    %24 = arith.truncf %23 : vector<16x128xf32> to vector<16x128xbf16>
    %c0_15 = arith.constant 0 : index
    %c0_16 = arith.constant 0 : index
    %25 = vector.load %arg5[%c0_15, %c0_16] : memref<128x128xbf16, #tpu.memory_space<vmem>>, vector<128x128xbf16>
    %cst_17 = arith.constant dense<0.000000e+00> : vector<16x128xf32>
    %26 = tpu.matmul %24, %25, %cst_17 {dimension_numbers = #tpu.dot_dimension_numbers<[1], [0], [0], [1], [0, 0, 1, 1], [], []>} : vector<16x128xbf16>, vector<128x128xbf16>, vector<16x128xf32> -> vector<16x128xf32>
    %c0_18 = arith.constant 0 : index
    %c0_19 = arith.constant 0 : index
    %27 = vector.load %arg6[%c0_18, %c0_19] : memref<1x128xf32, #tpu.memory_space<vmem>>, vector<1x128xf32>
    %28 = vector.broadcast %27 : vector<1x128xf32> to vector<16x128xf32>
    %29 = arith.addf %26, %28 : vector<16x128xf32>
    %30 = arith.truncf %29 : vector<16x128xf32> to vector<16x128xbf16>
    %cst_20 = arith.constant 0.000000e+00 : bf16
    %31 = vector.broadcast %cst_20 : bf16 to vector<16x128xbf16>
    %32 = arith.cmpf ogt, %30, %31 : vector<16x128xbf16>
    %cst_21 = arith.constant 1.000980e-02 : bf16
    %33 = vector.broadcast %cst_21 : bf16 to vector<16x128xbf16>
    %34 = arith.mulf %33, %30 : vector<16x128xbf16>
    %35 = arith.select %32, %30, %34 : vector<16x128xi1>, vector<16x128xbf16>
    %c0_22 = arith.constant 0 : index
    %c0_23 = arith.constant 0 : index
    %36 = vector.load %arg7[%c0_22, %c0_23] : memref<128x128xbf16, #tpu.memory_space<vmem>>, vector<128x128xbf16>
    %cst_24 = arith.constant dense<0.000000e+00> : vector<16x128xf32>
    %37 = tpu.matmul %35, %36, %cst_24 {dimension_numbers = #tpu.dot_dimension_numbers<[1], [0], [0], [1], [0, 0, 1, 1], [], []>} : vector<16x128xbf16>, vector<128x128xbf16>, vector<16x128xf32> -> vector<16x128xf32>
    %c0_25 = arith.constant 0 : index
    %c0_26 = arith.constant 0 : index
    %38 = vector.load %arg8[%c0_25, %c0_26] : memref<1x128xf32, #tpu.memory_space<vmem>>, vector<1x128xf32>
    %39 = vector.broadcast %38 : vector<1x128xf32> to vector<16x128xf32>
    %40 = arith.addf %37, %39 : vector<16x128xf32>
    %c0_27 = arith.constant 0 : index
    %c0_28 = arith.constant 0 : index
    %41 = vector.load %arg9[%c0_27, %c0_28] : memref<16x128xf32, #tpu.memory_space<vmem>>, vector<16x128xf32>
    tpu.vector_store %arg9[%c0_27, %c0_28], %40 {strides = array<i32>} : memref<16x128xf32, #tpu.memory_space<vmem>>, vector<16x128xf32>,
    return
  }
}

</mosaic_0001>

<llo_original>
// kernel: ae_forward.1
$region0: #{ae_forward.1}
  #allocation0 [shape = 'u32[]', space=smem, size = 0x4, offset = 0x4, fixed_abs, tag = 'smem constant byte address 0x4 - core index']
  #allocation1 [shape = 'u32[144,128]{1,0:T(1,128)}', space=vmem, size = 0x12000, scoped, tag = 'internal scratch']
  %s0 = inlined_call_operand.vmem [shape: bf16[16,128], index: 0, kind: input, shape index: {}]
  %s1 = inlined_call_operand.hbm [shape: bf16[128,128], index: 1, kind: input, shape index: {}]
  %s2 = inlined_call_operand.vmem [shape: f32[1,128], index: 2, kind: input, shape index: {}]
  %s3 = inlined_call_operand.hbm [shape: bf16[128,128], index: 3, kind: input, shape index: {}]
  %s4 = inlined_call_operand.vmem [shape: f32[1,128], index: 4, kind: input, shape index: {}]
  %s5 = inlined_call_operand.hbm [shape: bf16[128,128], index: 5, kind: input, shape index: {}]
  %s6 = inlined_call_operand.vmem [shape: f32[1,128], index: 6, kind: input, shape index: {}]
  %s7 = inlined_call_operand.hbm [shape: bf16[128,128], index: 7, kind: input, shape index: {}]
  %s8 = inlined_call_operand.vmem [shape: f32[1,128], index: 8, kind: input, shape index: {}]
  %s9 = inlined_call_operand.vmem [shape: f32[16,128], index: 9, kind: output, shape index: {}]
  %s10 = sld [smem:[#allocation0]]
  $region62: #{ae_forward.1} parent=0
    _
  %s12 = ssub.s32 1, %s10
  %s13 = scalar_select 0, %s12, %s10
  $region1: #{ae_forward.1} parent=0
    #allocation2 [shape = 'u8[32768]{0}', space=vmem, size = 0x8000, scoped, tag = 'input window, operand 1, single buffered']
    #allocation3 [shape = 's32[1]{0}', space=sflag, size = 0x4, scoped, tag = 'scoped memory for ae_forward.1']
    #allocation4 [shape = 'u8[32768]{0}', space=vmem, size = 0x8000, scoped, tag = 'input window, operand 3, single buffered']
    #allocation5 [shape = 's32[1]{0}', space=sflag, size = 0x4, scoped, tag = 'scoped memory for ae_forward.1']
    #allocation6 [shape = 'u8[32768]{0}', space=vmem, size = 0x8000, scoped, tag = 'input window, operand 5, single buffered']
    #allocation7 [shape = 'u8[32768]{0}', space=vmem, size = 0x8000, scoped, tag = 'input window, operand 7, single buffered']
    #allocation8 [shape = 's32[1]{0}', space=sflag, size = 0x4, scoped, tag = 'scoped memory for ae_forward.1']
    %14 = vsyncpa [#allocation3], 0
    %15 = vsyncpa [#allocation5], 0
    %16 = vsyncpa [#allocation8], 0
    // Predicated region
    $region2: #{ae_forward.1} parent=1 // pred_check
      _
    $region3: #{ae_forward.1} parent=1 // pred_check_branch
      %18 = sbr.rel (0) target = $region5
    $region4: #{ae_forward.1} parent=1 // pred_region
      _
    $region5: #{ae_forward.1} parent=1 // pred_fallthru
      _
    // Predicated region
    $region6: #{ae_forward.1} parent=1 // pred_check
      _
    $region7: #{ae_forward.1} parent=1 // pred_check_branch
      %20 = sbr.rel (0) target = $region9
    $region8: #{ae_forward.1} parent=1 // pred_region
      %s22 = ssub.s32 1024, 1024
      %23 = vsyncadd [#allocation3], %s22
      %s24 = sshll.u32 [#allocation2], 4
      %s25 = int_to_ptr.vmem [resolvable:$true] %s24
      %30 = dma.hbm_to_vmem [thread:$0]  %s1, 1024, %s25, [#allocation3], 64, 64, 4
    $region9: #{ae_forward.1} parent=1 // pred_fallthru
      _
    // Predicated region
    $region10: #{ae_forward.1} parent=1 // pred_check
      _
    $region11: #{ae_forward.1} parent=1 // pred_check_branch
      %32 = sbr.rel (0) target = $region13
    $region12: #{ae_forward.1} parent=1 // pred_region
      _
    $region13: #{ae_forward.1} parent=1 // pred_fallthru
      _
    // Predicated region
    $region14: #{ae_forward.1} parent=1 // pred_check
      _
    $region15: #{ae_forward.1} parent=1 // pred_check_branch
      %34 = sbr.rel (0) target = $region17
    $region16: #{ae_forward.1} parent=1 // pred_region
      %s36 = ssub.s32 1024, 1024
      %37 = vsyncadd [#allocation5], %s36
      %s38 = sshll.u32 [#allocation4], 4
      %s39 = int_to_ptr.vmem [resolvable:$true] %s38
      %44 = dma.hbm_to_vmem [thread:$0]  %s3, 1024, %s39, [#allocation5], 64, 64, 4
    $region17: #{ae_forward.1} parent=1 // pred_fallthru
      _
    // Predicated region
    $region18: #{ae_forward.1} parent=1 // pred_check
      _
    $region19: #{ae_forward.1} parent=1 // pred_check_branch
      %46 = sbr.rel (0) target = $region21
    $region20: #{ae_forward.1} parent=1 // pred_region
      _
    $region21: #{ae_forward.1} parent=1 // pred_fallthru
      _
    // Predicated region
    $region22: #{ae_forward.1} parent=1 // pred_check
      _
    $region23: #{ae_forward.1} parent=1 // pred_check_branch
      %48 = sbr.rel (0) target = $region25
    $region24: #{ae_forward.1} parent=1 // pred_region
      %s50 = ssub.s32 1024, 1024
      %51 = vsyncadd [#allocation5], %s50
      %s52 = sshll.u32 [#allocation6], 4
      %s53 = int_to_ptr.vmem [resolvable:$true] %s52
      %58 = dma.hbm_to_vmem [thread:$0]  %s5, 1024, %s53, [#allocation5], 64, 64, 4
    $region25: #{ae_forward.1} parent=1 // pred_fallthru
      _
    // Predicated region
    $region26: #{ae_forward.1} parent=1 // pred_check
      _
    $region27: #{ae_forward.1} parent=1 // pred_check_branch
      %60 = sbr.rel (0) target = $region29
    $region28: #{ae_forward.1} parent=1 // pred_region
      _
    $region29: #{ae_forward.1} parent=1 // pred_fallthru
      _
    // Predicated region
    $region30: #{ae_forward.1} parent=1 // pred_check
      _
    $region31: #{ae_forward.1} parent=1 // pred_check_branch
      %62 = sbr.rel (0) target = $region33
    $region32: #{ae_forward.1} parent=1 // pred_region
      %s64 = ssub.s32 1024, 1024
      %65 = vsyncadd [#allocation8], %s64
      %s66 = sshll.u32 [#allocation7], 4
      %s67 = int_to_ptr.vmem [resolvable:$true] %s66
      %72 = dma.hbm_to_vmem [thread:$0]  %s7, 1024, %s67, [#allocation8], 64, 64, 4
    $region33: #{ae_forward.1} parent=1 // pred_fallthru
      _
    // Predicated region
    $region34: #{ae_forward.1} parent=1 // pred_check
      _
    $region35: #{ae_forward.1} parent=1 // pred_check_branch
      %74 = sbr.rel (0) target = $region37
    $region36: #{ae_forward.1} parent=1 // pred_region
      _
    $region37: #{ae_forward.1} parent=1 // pred_fallthru
      _
    // Predicated region
    $region38: #{ae_forward.1} parent=1 // pred_check
      _
    $region39: #{ae_forward.1} parent=1 // pred_check_branch
      %76 = sbr.rel (0) target = $region41
    $region40: #{ae_forward.1} parent=1 // pred_region
      %77 = dma.done [#allocation3], 1024
    $region41: #{ae_forward.1} parent=1 // pred_fallthru
      _
    // Predicated region
    $region42: #{ae_forward.1} parent=1 // pred_check
      _
    $region43: #{ae_forward.1} parent=1 // pred_check_branch
      %79 = sbr.rel (0) target = $region45
    $region44: #{ae_forward.1} parent=1 // pred_region
      %80 = dma.done [#allocation5], 1024
    $region45: #{ae_forward.1} parent=1 // pred_fallthru
      _
    // Predicated region
    $region46: #{ae_forward.1} parent=1 // pred_check
      _
    $region47: #{ae_forward.1} parent=1 // pred_check_branch
      %82 = sbr.rel (0) target = $region49
    $region48: #{ae_forward.1} parent=1 // pred_region
      %83 = dma.done [#allocation5], 1024
    $region49: #{ae_forward.1} parent=1 // pred_fallthru
      _
    // Predicated region
    $region50: #{ae_forward.1} parent=1 // pred_check
      _
    $region51: #{ae_forward.1} parent=1 // pred_check_branch
      %85 = sbr.rel (0) target = $region53
    $region52: #{ae_forward.1} parent=1 // pred_region
      %86 = dma.done [#allocation8], 1024
    $region53: #{ae_forward.1} parent=1 // pred_fallthru
      _
    %v89 = vld [vmem:[%s0] sm:$0xf]
    %v90 = vld [vmem:[%s0 + $0x4] sm:$0xf]
    %v91 = vld [vmem:[#allocation2] sm:$0xf]
    %v92 = vld [vmem:[#allocation2 + $0x4] sm:$0xf]
    %v93 = vld [vmem:[#allocation2 + $0x8] sm:$0xf]
    %v94 = vld [vmem:[#allocation2 + $0xc] sm:$0xf]
    %v95 = vld [vmem:[#allocation2 + $0x10] sm:$0xf]
    %v96 = vld [vmem:[#allocation2 + $0x14] sm:$0xf]
    %v97 = vld [vmem:[#allocation2 + $0x18] sm:$0xf]
    %v98 = vld [vmem:[#allocation2 + $0x1c] sm:$0xf]
    %v99 = vld [vmem:[#allocation2 + $0x20] sm:$0xf]
    %v100 = vld [vmem:[#allocation2 + $0x24] sm:$0xf]
    %v101 = vld [vmem:[#allocation2 + $0x28] sm:$0xf]
    %v102 = vld [vmem:[#allocation2 + $0x2c] sm:$0xf]
    %v103 = vld [vmem:[#allocation2 + $0x30] sm:$0xf]
    %v104 = vld [vmem:[#allocation2 + $0x34] sm:$0xf]
    %v105 = vld [vmem:[#allocation2 + $0x38] sm:$0xf]
    %v106 = vld [vmem:[#allocation2 + $0x3c] sm:$0xf]
    %v107 = vld [vmem:[%s2] sm:$0x1]
    %v109 = vlaneseq
    %v110 = vshrl.u32 %v109, 7
    %v111 = vsub.s32 0, %v110
    %v112 = vrot.slane %v107, %v111
    %v116 = vunpack.c.l.b16 %v89
    %v117 = vunpack.c.l.b16 %v90
    %v118 = vpack.c.b16 %v117, %v116
    %v136 = vunpack.c.l.b16 %v91
    %v137 = vunpack.c.l.b16 %v92
    %v138 = vunpack.c.l.b16 %v93
    %v139 = vunpack.c.l.b16 %v94
    %v140 = vunpack.c.l.b16 %v95
    %v141 = vunpack.c.l.b16 %v96
    %v142 = vunpack.c.l.b16 %v97
    %v143 = vunpack.c.l.b16 %v98
    %v144 = vunpack.c.l.b16 %v99
    %v145 = vunpack.c.l.b16 %v100
    %v146 = vunpack.c.l.b16 %v101
    %v147 = vunpack.c.l.b16 %v102
    %v148 = vunpack.c.l.b16 %v103
    %v149 = vunpack.c.l.b16 %v104
    %v150 = vunpack.c.l.b16 %v105
    %v151 = vunpack.c.l.b16 %v106
    %v152 = vpack.c.b16 %v137, %v136
    %v153 = vpack.c.b16 %v139, %v138
    %v154 = vpack.c.b16 %v141, %v140
    %v155 = vpack.c.b16 %v143, %v142
    %v156 = vpack.c.b16 %v145, %v144
    %v157 = vpack.c.b16 %v147, %v146
    %v158 = vpack.c.b16 %v149, %v148
    %v159 = vpack.c.b16 %v151, %v150
    %168 = vmatprep.subr.bf16.mxu0 0
    %169 = vmatpush1.bf16.msra.mxu0 %v152
    %170 = vmatprep.subr.bf16.mxu0 0
    %171 = vmatpush1.bf16.msra.mxu0 %v153
    %172 = vmatprep.subr.bf16.mxu0 0
    %173 = vmatpush1.bf16.msra.mxu0 %v154
    %174 = vmatprep.subr.bf16.mxu0 0
    %175 = vmatpush1.bf16.msra.mxu0 %v155
    %176 = vmatprep.subr.bf16.mxu0 0
    %177 = vmatpush1.bf16.msra.mxu0 %v156
    %178 = vmatprep.subr.bf16.mxu0 0
    %179 = vmatpush1.bf16.msra.mxu0 %v157
    %180 = vmatprep.subr.bf16.mxu0 0
    %181 = vmatpush1.bf16.msra.mxu0 %v158
    %182 = vmatprep.subr.bf16.mxu0 0
    %183 = vmatpush1.bf16.msra.mxu0 %v159
    %184 = vmatprep.subr.bf16.mxu0 0
    %185 = vmatpush1.bf16.msra.mxu0 0
    %186 = vmatprep.subr.bf16.mxu0 0
    %187 = vmatpush1.bf16.msra.mxu0 0
    %188 = vmatprep.subr.bf16.mxu0 0
    %189 = vmatpush1.bf16.msra.mxu0 0
    %190 = vmatprep.subr.bf16.mxu0 0
    %191 = vmatpush1.bf16.msra.mxu0 0
    %192 = vmatprep.subr.bf16.mxu0 0
    %193 = vmatpush1.bf16.msra.mxu0 0
    %194 = vmatprep.subr.bf16.mxu0 0
    %195 = vmatpush1.bf16.msra.mxu0 0
    %196 = vmatprep.subr.bf16.mxu0 0
    %197 = vmatpush1.bf16.msra.mxu0 0
    %198 = vmatprep.subr.bf16.mxu0 0
    %199 = vmatpush1.bf16.msra.mxu0 0
    %200 = vmatprep.mubr.bf16.mxu0 0
    %201 = vmatmul.mubr.bf16.gmra.mrb[0].mxu0 %v118
    %v202 = vpop.f32.mrb[0].mxu0
    %v203 = vadd.f32 %v112, %v202
    %v204 = vpop.f32.mrb[0].mxu0
    %v205 = vpop.f32.mrb[0].mxu0
    %v206 = vadd.f32 %v112, %v205
    %v207 = vpop.f32.mrb[0].mxu0
    %208 = vdwg.mxu0
    %v209 = vpack.c.bf16 %v206, %v203
    %vm210 = vcmp.gt.bf16.partialorder %v209, 0
    %v211 = vmul.bf16 %v209, 1009007652
    %v212 = vsel %vm210, %v209, %v211
    %v213 = vld [vmem:[#allocation4] sm:$0xf]
    %v214 = vld [vmem:[#allocation4 + $0x4] sm:$0xf]
    %v215 = vld [vmem:[#allocation4 + $0x8] sm:$0xf]
    %v216 = vld [vmem:[#allocation4 + $0xc] sm:$0xf]
    %v217 = vld [vmem:[#allocation4 + $0x10] sm:$0xf]
    %v218 = vld [vmem:[#allocation4 + $0x14] sm:$0xf]
    %v219 = vld [vmem:[#allocation4 + $0x18] sm:$0xf]
    %v220 = vld [vmem:[#allocation4 + $0x1c] sm:$0xf]
    %v221 = vld [vmem:[#allocation4 + $0x20] sm:$0xf]
    %v222 = vld [vmem:[#allocation4 + $0x24] sm:$0xf]
    %v223 = vld [vmem:[#allocation4 + $0x28] sm:$0xf]
    %v224 = vld [vmem:[#allocation4 + $0x2c] sm:$0xf]
    %v225 = vld [vmem:[#allocation4 + $0x30] sm:$0xf]
    %v226 = vld [vmem:[#allocation4 + $0x34] sm:$0xf]
    %v227 = vld [vmem:[#allocation4 + $0x38] sm:$0xf]
    %v228 = vld [vmem:[#allocation4 + $0x3c] sm:$0xf]
    %v229 = vld [vmem:[%s4] sm:$0x1]
    %v231 = vlaneseq
    %v232 = vshrl.u32 %v231, 7
    %v233 = vsub.s32 0, %v232
    %v234 = vrot.slane %v229, %v233
    %v252 = vunpack.c.l.b16 %v213
    %v253 = vunpack.c.l.b16 %v214
    %v254 = vunpack.c.l.b16 %v215
    %v255 = vunpack.c.l.b16 %v216
    %v256 = vunpack.c.l.b16 %v217
    %v257 = vunpack.c.l.b16 %v218
    %v258 = vunpack.c.l.b16 %v219
    %v259 = vunpack.c.l.b16 %v220
    %v260 = vunpack.c.l.b16 %v221
    %v261 = vunpack.c.l.b16 %v222
    %v262 = vunpack.c.l.b16 %v223
    %v263 = vunpack.c.l.b16 %v224
    %v264 = vunpack.c.l.b16 %v225
    %v265 = vunpack.c.l.b16 %v226
    %v266 = vunpack.c.l.b16 %v227
    %v267 = vunpack.c.l.b16 %v228
    %v268 = vpack.c.b16 %v253, %v252
    %v269 = vpack.c.b16 %v255, %v254
    %v270 = vpack.c.b16 %v257, %v256
    %v271 = vpack.c.b16 %v259, %v258
    %v272 = vpack.c.b16 %v261, %v260
    %v273 = vpack.c.b16 %v263, %v262
    %v274 = vpack.c.b16 %v265, %v264
    %v275 = vpack.c.b16 %v267, %v266
    %284 = vmatprep.subr.bf16.mxu0 0
    %285 = vmatpush1.bf16.msra.mxu0 %v268
    %286 = vmatprep.subr.bf16.mxu0 0
    %287 = vmatpush1.bf16.msra.mxu0 %v269
    %288 = vmatprep.subr.bf16.mxu0 0
    %289 = vmatpush1.bf16.msra.mxu0 %v270
    %290 = vmatprep.subr.bf16.mxu0 0
    %291 = vmatpush1.bf16.msra.mxu0 %v271
    %292 = vmatprep.subr.bf16.mxu0 0
    %293 = vmatpush1.bf16.msra.mxu0 %v272
    %294 = vmatprep.subr.bf16.mxu0 0
    %295 = vmatpush1.bf16.msra.mxu0 %v273
    %296 = vmatprep.subr.bf16.mxu0 0
    %297 = vmatpush1.bf16.msra.mxu0 %v274
    %298 = vmatprep.subr.bf16.mxu0 0
    %299 = vmatpush1.bf16.msra.mxu0 %v275
    %300 = vmatprep.subr.bf16.mxu0 0
    %301 = vmatpush1.bf16.msra.mxu0 0
    %302 = vmatprep.subr.bf16.mxu0 0
    %303 = vmatpush1.bf16.msra.mxu0 0
    %304 = vmatprep.subr.bf16.mxu0 0
    %305 = vmatpush1.bf16.msra.mxu0 0
    %306 = vmatprep.subr.bf16.mxu0 0
    %307 = vmatpush1.bf16.msra.mxu0 0
    %308 = vmatprep.subr.bf16.mxu0 0
    %309 = vmatpush1.bf16.msra.mxu0 0
    %310 = vmatprep.subr.bf16.mxu0 0
    %311 = vmatpush1.bf16.msra.mxu0 0
    %312 = vmatprep.subr.bf16.mxu0 0
    %313 = vmatpush1.bf16.msra.mxu0 0
    %314 = vmatprep.subr.bf16.mxu0 0
    %315 = vmatpush1.bf16.msra.mxu0 0
    %316 = vmatprep.mubr.bf16.mxu0 0
    %317 = vmatmul.mubr.bf16.gmra.mrb[0].mxu0 %v212
    %v318 = vpop.f32.mrb[0].mxu0
    %v319 = vadd.f32 %v234, %v318
    %v320 = vpop.f32.mrb[0].mxu0
    %v321 = vpop.f32.mrb[0].mxu0
    %v322 = vadd.f32 %v234, %v321
    %v323 = vpop.f32.mrb[0].mxu0
    %324 = vdwg.mxu0
    %v325 = vmul.f32 %v319, 0.5
    %v326 = vmul.f32 %v322, 0.5
    %v327 = vtanh.pop %v325
    %v328 = vtanh.pop %v326
    %v329 = vmul.f32 %v327, 0.5
    %v330 = vmul.f32 %v328, 0.5
    %v331 = vadd.f32 %v329, 0.5
    %v332 = vadd.f32 %v330, 0.5
    %v333 = vpack.c.bf16 %v332, %v331
    %v334 = vld [vmem:[#allocation6] sm:$0xf]
    %v335 = vld [vmem:[#allocation6 + $0x4] sm:$0xf]
    %v336 = vld [vmem:[#allocation6 + $0x8] sm:$0xf]
    %v337 = vld [vmem:[#allocation6 + $0xc] sm:$0xf]
    %v338 = vld [vmem:[#allocation6 + $0x10] sm:$0xf]
    %v339 = vld [vmem:[#allocation6 + $0x14] sm:$0xf]
    %v340 = vld [vmem:[#allocation6 + $0x18] sm:$0xf]
    %v341 = vld [vmem:[#allocation6 + $0x1c] sm:$0xf]
    %v342 = vld [vmem:[#allocation6 + $0x20] sm:$0xf]
    %v343 = vld [vmem:[#allocation6 + $0x24] sm:$0xf]
    %v344 = vld [vmem:[#allocation6 + $0x28] sm:$0xf]
    %v345 = vld [vmem:[#allocation6 + $0x2c] sm:$0xf]
    %v346 = vld [vmem:[#allocation6 + $0x30] sm:$0xf]
    %v347 = vld [vmem:[#allocation6 + $0x34] sm:$0xf]
    %v348 = vld [vmem:[#allocation6 + $0x38] sm:$0xf]
    %v349 = vld [vmem:[#allocation6 + $0x3c] sm:$0xf]
    %v350 = vld [vmem:[%s6] sm:$0x1]
    %v352 = vlaneseq
    %v353 = vshrl.u32 %v352, 7
    %v354 = vsub.s32 0, %v353
    %v355 = vrot.slane %v350, %v354
    %v373 = vunpack.c.l.b16 %v334
    %v374 = vunpack.c.l.b16 %v335
    %v375 = vunpack.c.l.b16 %v336
    %v376 = vunpack.c.l.b16 %v337
    %v377 = vunpack.c.l.b16 %v338
    %v378 = vunpack.c.l.b16 %v339
    %v379 = vunpack.c.l.b16 %v340
    %v380 = vunpack.c.l.b16 %v341
    %v381 = vunpack.c.l.b16 %v342
    %v382 = vunpack.c.l.b16 %v343
    %v383 = vunpack.c.l.b16 %v344
    %v384 = vunpack.c.l.b16 %v345
    %v385 = vunpack.c.l.b16 %v346
    %v386 = vunpack.c.l.b16 %v347
    %v387 = vunpack.c.l.b16 %v348
    %v388 = vunpack.c.l.b16 %v349
    %v389 = vpack.c.b16 %v374, %v373
    %v390 = vpack.c.b16 %v376, %v375
    %v391 = vpack.c.b16 %v378, %v377
    %v392 = vpack.c.b16 %v380, %v379
    %v393 = vpack.c.b16 %v382, %v381
    %v394 = vpack.c.b16 %v384, %v383
    %v395 = vpack.c.b16 %v386, %v385
    %v396 = vpack.c.b16 %v388, %v387
    %405 = vmatprep.subr.bf16.mxu0 0
    %406 = vmatpush1.bf16.msra.mxu0 %v389
    %407 = vmatprep.subr.bf16.mxu0 0
    %408 = vmatpush1.bf16.msra.mxu0 %v390
    %409 = vmatprep.subr.bf16.mxu0 0
    %410 = vmatpush1.bf16.msra.mxu0 %v391
    %411 = vmatprep.subr.bf16.mxu0 0
    %412 = vmatpush1.bf16.msra.mxu0 %v392
    %413 = vmatprep.subr.bf16.mxu0 0
    %414 = vmatpush1.bf16.msra.mxu0 %v393
    %415 = vmatprep.subr.bf16.mxu0 0
    %416 = vmatpush1.bf16.msra.mxu0 %v394
    %417 = vmatprep.subr.bf16.mxu0 0
    %418 = vmatpush1.bf16.msra.mxu0 %v395
    %419 = vmatprep.subr.bf16.mxu0 0
    %420 = vmatpush1.bf16.msra.mxu0 %v396
    %421 = vmatprep.subr.bf16.mxu0 0
    %422 = vmatpush1.bf16.msra.mxu0 0
    %423 = vmatprep.subr.bf16.mxu0 0
    %424 = vmatpush1.bf16.msra.mxu0 0
    %425 = vmatprep.subr.bf16.mxu0 0
    %426 = vmatpush1.bf16.msra.mxu0 0
    %427 = vmatprep.subr.bf16.mxu0 0
    %428 = vmatpush1.bf16.msra.mxu0 0
    %429 = vmatprep.subr.bf16.mxu0 0
    %430 = vmatpush1.bf16.msra.mxu0 0
    %431 = vmatprep.subr.bf16.mxu0 0
    %432 = vmatpush1.bf16.msra.mxu0 0
    %433 = vmatprep.subr.bf16.mxu0 0
    %434 = vmatpush1.bf16.msra.mxu0 0
    %435 = vmatprep.subr.bf16.mxu0 0
    %436 = vmatpush1.bf16.msra.mxu0 0
    %437 = vmatprep.mubr.bf16.mxu0 0
    %438 = vmatmul.mubr.bf16.gmra.mrb[0].mxu0 %v333
    %v439 = vpop.f32.mrb[0].mxu0
    %v440 = vadd.f32 %v355, %v439
    %v441 = vpop.f32.mrb[0].mxu0
    %v442 = vpop.f32.mrb[0].mxu0
    %v443 = vadd.f32 %v355, %v442
    %v444 = vpop.f32.mrb[0].mxu0
    %445 = vdwg.mxu0
    %v446 = vpack.c.bf16 %v443, %v440
    %vm447 = vcmp.gt.bf16.partialorder %v446, 0
    %v448 = vmul.bf16 %v446, 1009007652
    %v449 = vsel %vm447, %v446, %v448
    %v450 = vld [vmem:[#allocation7] sm:$0xf]
    %v451 = vld [vmem:[#allocation7 + $0x4] sm:$0xf]
    %v452 = vld [vmem:[#allocation7 + $0x8] sm:$0xf]
    %v453 = vld [vmem:[#allocation7 + $0xc] sm:$0xf]
    %v454 = vld [vmem:[#allocation7 + $0x10] sm:$0xf]
    %v455 = vld [vmem:[#allocation7 + $0x14] sm:$0xf]
    %v456 = vld [vmem:[#allocation7 + $0x18] sm:$0xf]
    %v457 = vld [vmem:[#allocation7 + $0x1c] sm:$0xf]
    %v458 = vld [vmem:[#allocation7 + $0x20] sm:$0xf]
    %v459 = vld [vmem:[#allocation7 + $0x24] sm:$0xf]
    %v460 = vld [vmem:[#allocation7 + $0x28] sm:$0xf]
    %v461 = vld [vmem:[#allocation7 + $0x2c] sm:$0xf]
    %v462 = vld [vmem:[#allocation7 + $0x30] sm:$0xf]
    %v463 = vld [vmem:[#allocation7 + $0x34] sm:$0xf]
    %v464 = vld [vmem:[#allocation7 + $0x38] sm:$0xf]
    %v465 = vld [vmem:[#allocation7 + $0x3c] sm:$0xf]
    %v466 = vld [vmem:[%s8] sm:$0x1]
    %v468 = vlaneseq
    %v469 = vshrl.u32 %v468, 7
    %v470 = vsub.s32 0, %v469
    %v471 = vrot.slane %v466, %v470
    %v489 = vunpack.c.l.b16 %v450
    %v490 = vunpack.c.l.b16 %v451
    %v491 = vunpack.c.l.b16 %v452
    %v492 = vunpack.c.l.b16 %v453
    %v493 = vunpack.c.l.b16 %v454
    %v494 = vunpack.c.l.b16 %v455
    %v495 = vunpack.c.l.b16 %v456
    %v496 = vunpack.c.l.b16 %v457
    %v497 = vunpack.c.l.b16 %v458
    %v498 = vunpack.c.l.b16 %v459
    %v499 = vunpack.c.l.b16 %v460
    %v500 = vunpack.c.l.b16 %v461
    %v501 = vunpack.c.l.b16 %v462
    %v502 = vunpack.c.l.b16 %v463
    %v503 = vunpack.c.l.b16 %v464
    %v504 = vunpack.c.l.b16 %v465
    %v505 = vpack.c.b16 %v490, %v489
    %v506 = vpack.c.b16 %v492, %v491
    %v507 = vpack.c.b16 %v494, %v493
    %v508 = vpack.c.b16 %v496, %v495
    %v509 = vpack.c.b16 %v498, %v497
    %v510 = vpack.c.b16 %v500, %v499
    %v511 = vpack.c.b16 %v502, %v501
    %v512 = vpack.c.b16 %v504, %v503
    %521 = vmatprep.subr.bf16.mxu0 0
    %522 = vmatpush1.bf16.msra.mxu0 %v505
    %523 = vmatprep.subr.bf16.mxu0 0
    %524 = vmatpush1.bf16.msra.mxu0 %v506
    %525 = vmatprep.subr.bf16.mxu0 0
    %526 = vmatpush1.bf16.msra.mxu0 %v507
    %527 = vmatprep.subr.bf16.mxu0 0
    %528 = vmatpush1.bf16.msra.mxu0 %v508
    %529 = vmatprep.subr.bf16.mxu0 0
    %530 = vmatpush1.bf16.msra.mxu0 %v509
    %531 = vmatprep.subr.bf16.mxu0 0
    %532 = vmatpush1.bf16.msra.mxu0 %v510
    %533 = vmatprep.subr.bf16.mxu0 0
    %534 = vmatpush1.bf16.msra.mxu0 %v511
    %535 = vmatprep.subr.bf16.mxu0 0
    %536 = vmatpush1.bf16.msra.mxu0 %v512
    %537 = vmatprep.subr.bf16.mxu0 0
    %538 = vmatpush1.bf16.msra.mxu0 0
    %539 = vmatprep.subr.bf16.mxu0 0
    %540 = vmatpush1.bf16.msra.mxu0 0
    %541 = vmatprep.subr.bf16.mxu0 0
    %542 = vmatpush1.bf16.msra.mxu0 0
    %543 = vmatprep.subr.bf16.mxu0 0
    %544 = vmatpush1.bf16.msra.mxu0 0
    %545 = vmatprep.subr.bf16.mxu0 0
    %546 = vmatpush1.bf16.msra.mxu0 0
    %547 = vmatprep.subr.bf16.mxu0 0
    %548 = vmatpush1.bf16.msra.mxu0 0
    %549 = vmatprep.subr.bf16.mxu0 0
    %550 = vmatpush1.bf16.msra.mxu0 0
    %551 = vmatprep.subr.bf16.mxu0 0
    %552 = vmatpush1.bf16.msra.mxu0 0
    %553 = vmatprep.mubr.bf16.mxu0 0
    %554 = vmatmul.mubr.bf16.gmra.mrb[0].mxu0 %v449
    %v555 = vpop.f32.mrb[0].mxu0
    %v556 = vadd.f32 %v471, %v555
    %v557 = vpop.f32.mrb[0].mxu0
    %v558 = vpop.f32.mrb[0].mxu0
    %v559 = vadd.f32 %v471, %v558
    %v560 = vpop.f32.mrb[0].mxu0
    %561 = vdwg.mxu0
    %562 = vst [vmem:[%s9] sm:$0xff] %v556
    %563 = vst [vmem:[%s9 + $0x8] sm:$0xff] %v559
    // Predicated region
    $region54: #{ae_forward.1} parent=1 // pred_check
      _
    $region55: #{ae_forward.1} parent=1 // pred_check_branch
      %565 = sbr.rel (0) target = $region57
    $region56: #{ae_forward.1} parent=1 // pred_region
      _
    $region57: #{ae_forward.1} parent=1 // pred_fallthru
      _
    // Predicated region
    $region58: #{ae_forward.1} parent=1 // pred_check
      _
    $region59: #{ae_forward.1} parent=1 // pred_check_branch
      %567 = sbr.rel (0) target = $region61
    $region60: #{ae_forward.1} parent=1 // pred_region
      _
    $region61: #{ae_forward.1} parent=1 // pred_fallthru
      _
    %568 = vsyncpa [#allocation3], 1
    %569 = vsyncpa [#allocation5], 1
    %570 = vsyncpa [#allocation8], 1

</llo_original>
